<compile_context>
chip_gen: v7x
topology: tpu7x:2x2x1
jax: 0.10.0
libtpu: 0.0.40
codegen_flags: <defaults>
</compile_context>

<pallas_src>
import functools
import math

import jax
import jax.numpy as jnp
from jax.experimental import pallas as pl
from jax.experimental.pallas import tpu as pltpu

LN_EPS = 1e-5  # nn.LayerNorm default


def _poller_end_kernel(x_ref, w1_ref, b1_ref, g_ref, beta_ref, w2_ref, b2_ref,
                       o_ref, *, inv_h, tanh_dtype):
    # x_ref:     (tm, H)   input dtype (true hidden width)
    # w1_ref:    (H, Hp)   matmul dtype, pre-transposed, lane-padded out dim
    # b1/g/beta: (1, Hp)   f32 (padded lanes are exact zeros)
    # w2_ref:    (Hp, Lp)  matmul dtype, pre-transposed + padded
    # b2_ref:    (1, Lp)   f32
    # o_ref:     (tm, Lp)
    w1 = w1_ref[...]
    # linear1 on the MXU: low-precision operands, f32 accumulation.
    h = jnp.dot(x_ref[...].astype(w1.dtype), w1,
                preferred_element_type=jnp.float32)
    h = h + b1_ref[...]

    # tanh on the EUP (optionally bf16 on v6e/v7x); statistics stay f32.
    if tanh_dtype == jnp.float32:
        t = jnp.tanh(h)
    else:
        t = jnp.tanh(h.astype(tanh_dtype)).astype(jnp.float32)

    # One-pass LayerNorm statistics over the TRUE hidden width: padded lanes
    # are exact zeros, so summing over Hp and dividing by H is exact.
    mean = jnp.sum(t, axis=-1, keepdims=True) * inv_h
    mean_sq = jnp.sum(t * t, axis=-1, keepdims=True) * inv_h
    var = jnp.maximum(mean_sq - mean * mean, 0.0)
    ln = (t - mean) * jax.lax.rsqrt(var + LN_EPS) * g_ref[...] + beta_ref[...]

    # linear2 on the MXU (lane-padded output width -> unmasked stores).
    w2 = w2_ref[...]
    out = jnp.dot(ln.astype(w2.dtype), w2, preferred_element_type=jnp.float32)
    o_ref[...] = (out + b2_ref[...]).astype(o_ref.dtype)


def _round_up(v, m):
    return ((v + m - 1) // m) * m


@functools.partial(
    jax.jit,
    static_argnames=("block_rows", "matmul_dtype", "tanh_dtype",
                     "single_buffer_weights"))
def poller_end_layer(x, w1, b1, gamma, beta, w2, b2, *, block_rows=512,
                     matmul_dtype=jnp.bfloat16, tanh_dtype=jnp.float32,
                     single_buffer_weights=True):
    """x: (..., H). w1: (H, H), w2: (L, H) in PyTorch (out, in) layout.

    Returns (..., L).  matmul_dtype=jnp.float32 is the full-parity escape
    hatch (doubles resident-weight VMEM, halves MXU throughput).
    """
    H = x.shape[-1]
    L = w2.shape[0]
    lead = x.shape[:-1]
    rows = math.prod(lead) if lead else 1
    x2d = x.reshape(rows, H)

    # Lane-dense widths (multiples of 128) for every intermediate / output.
    Hp = _round_up(H, 128)
    Lp = _round_up(L, 128)

    # Row tile: large (amortize per-step overhead), multiple of 8, and clamped
    # so the "parallel" grid has >= 2 steps (v7x megacore) when rows allow it.
    rows8 = _round_up(rows, 8)
    tm = min(block_rows, rows8)
    if rows8 >= 16:
        tm = min(tm, _round_up(rows8 // 2, 8))
    tm = max(8, (tm // 8) * 8)
    grid = (pl.cdiv(rows, tm),)   # ragged last block handled by Pallas

    # One-time weight prep: transpose to (in, out), cast to the MXU dtype, and
    # zero-pad hidden/label dims to the lane-dense widths.  Zero-padded
    # gamma/beta/b1 lanes keep all padded intermediate lanes at exactly zero.
    w1t = w1.T.astype(matmul_dtype)                        # (H, H)
    w2t = w2.T.astype(matmul_dtype)                        # (H, L)
    if Hp != H:
        w1t = jnp.pad(w1t, ((0, 0), (0, Hp - H)))
        w2t = jnp.pad(w2t, ((0, Hp - H), (0, 0)))
    if Lp != L:
        w2t = jnp.pad(w2t, ((0, 0), (0, Lp - L)))

    def _vec(v, width):
        v = v.astype(jnp.float32)
        if width != v.shape[0]:
            v = jnp.pad(v, (0, width - v.shape[0]))
        return v.reshape(1, width)

    b1_2d = _vec(b1, Hp)
    g_2d = _vec(gamma, Hp)
    beta_2d = _vec(beta, Hp)
    b2_2d = _vec(b2, Lp)

    # Resident (grid-invariant) operands: single-buffer to halve their VMEM.
    def _resident(shape):
        if single_buffer_weights:
            return pl.BlockSpec(shape, lambda i: (0, 0),
                                pipeline_mode=pl.Buffered(buffer_count=1))
        return pl.BlockSpec(shape, lambda i: (0, 0))

    # Generation-aware VMEM limit (~80% of physical; 64 MiB fallback).
    try:
        vmem_cap = pltpu.get_tpu_info().vmem_capacity_bytes
    except Exception:
        vmem_cap = None
    if not vmem_cap:
        vmem_cap = 64 * 1024 * 1024
    vmem_limit = int(vmem_cap * 0.8)

    w_bytes = jnp.dtype(matmul_dtype).itemsize
    cost = pl.CostEstimate(
        flops=int(2 * rows * H * Hp + 2 * rows * Hp * Lp),
        transcendentals=int(rows * Hp),
        bytes_accessed=int(rows * H * x.dtype.itemsize
                           + (H * Hp + Hp * Lp) * w_bytes
                           + (3 * Hp + Lp) * 4
                           + rows * Lp * x.dtype.itemsize),
    )

    out = pl.pallas_call(
        functools.partial(_poller_end_kernel, inv_h=1.0 / H,
                          tanh_dtype=tanh_dtype),
        out_shape=jax.ShapeDtypeStruct((rows, Lp), x.dtype),
        grid_spec=pltpu.PrefetchScalarGridSpec(
            num_scalar_prefetch=0,
            grid=grid,
            in_specs=[
                pl.BlockSpec((tm, H), lambda i: (i, 0)),   # x tile (streamed)
                _resident((H, Hp)),                        # W1^T
                _resident((1, Hp)),                        # b1
                _resident((1, Hp)),                        # gamma
                _resident((1, Hp)),                        # beta
                _resident((Hp, Lp)),                       # W2^T
                _resident((1, Lp)),                        # b2
            ],
            out_specs=pl.BlockSpec((tm, Lp), lambda i: (i, 0)),
        ),
        compiler_params=pltpu.CompilerParams(
            dimension_semantics=("parallel",),
            vmem_limit_bytes=vmem_limit,
        ),
        cost_estimate=cost,
    )(x2d, w1t, b1_2d, g_2d, beta_2d, w2t, b2_2d)

    out = out[:, :L]
    return out.reshape(*lead, L)


def _reference(x, w1, b1, gamma, beta, w2, b2, matmul_dtype=jnp.float32):
    """Pure-JAX reference; matmul_dtype lets us mirror the kernel's bf16 MXU."""
    md = matmul_dtype
    h = jnp.dot(x.astype(md), w1.T.astype(md),
                preferred_element_type=jnp.float32) + b1
    t = jnp.tanh(h)
    mean = jnp.mean(t, axis=-1, keepdims=True)
    var = jnp.maximum(jnp.mean(t * t, axis=-1, keepdims=True) - mean * mean, 0.0)
    ln = (t - mean) * jax.lax.rsqrt(var + LN_EPS) * gamma + beta
    return jnp.dot(ln.astype(md), w2.T.astype(md),
                   preferred_element_type=jnp.float32) + b2


if __name__ == "__main__":
    # Small shapes consistent with the module: (batch, seq, hidden) -> (batch, seq, labels)
    batch, seq, num_hidden, num_labels = 2, 8, 32, 4

    key = jax.random.PRNGKey(0)
    kx, kw1, kb1, kw2, kb2 = jax.random.split(key, 5)

    x = jax.random.normal(kx, (batch, seq, num_hidden), dtype=jnp.float32)

    # Deterministic parameter init (nn.Linear-style uniform scaling).
    lim1 = 1.0 / (num_hidden ** 0.5)
    w1 = jax.random.uniform(kw1, (num_hidden, num_hidden), jnp.float32, -lim1, lim1)
    b1 = jax.random.uniform(kb1, (num_hidden,), jnp.float32, -lim1, lim1)
    gamma = jnp.ones((num_hidden,), jnp.float32)   # nn.LayerNorm weight init
    beta = jnp.zeros((num_hidden,), jnp.float32)   # nn.LayerNorm bias init
    w2 = jax.random.uniform(kw2, (num_labels, num_hidden), jnp.float32, -lim1, lim1)
    b2 = jax.random.uniform(kb2, (num_labels,), jnp.float32, -lim1, lim1)

    try:
        out = jax.block_until_ready(
            poller_end_layer(x, w1, b1, gamma, beta, w2, b2))
    except Exception:
        # Fallback if this JAX build rejects single-buffered resident operands.
        out = jax.block_until_ready(
            poller_end_layer(x, w1, b1, gamma, beta, w2, b2,
                             single_buffer_weights=False))

    assert out.shape == (batch, seq, num_labels), out.shape

    # Tight check vs a reference that mirrors the kernel's bf16-MXU / f32-acc.
    ref_matched = _reference(x, w1, b1, gamma, beta, w2, b2,
                             matmul_dtype=jnp.bfloat16)
    assert jnp.allclose(out, ref_matched, atol=1e-3, rtol=1e-3), \
        "mismatch vs matched (bf16-matmul) reference"

    # Loose sanity check vs the full-f32 module semantics (bf16 MXU rounding).
    ref_f32 = _reference(x, w1, b1, gamma, beta, w2, b2,
                         matmul_dtype=jnp.float32)
    assert jnp.allclose(out, ref_f32, atol=1e-1, rtol=1e-1), \
        "mismatch vs f32 reference"

    print("KERNEL_OK")
</pallas_src>

<mosaic_0001>
module attributes {stable_mosaic.version = 11 : i64} {
  func.func @_poller_end_kernel(%arg0: i32, %arg1: memref<8x32xf32, #tpu.memory_space<vmem>>, %arg2: memref<32x128xbf16, #tpu.memory_space<vmem>>, %arg3: memref<1x128xf32, #tpu.memory_space<vmem>>, %arg4: memref<1x128xf32, #tpu.memory_space<vmem>>, %arg5: memref<1x128xf32, #tpu.memory_space<vmem>>, %arg6: memref<128x128xbf16, #tpu.memory_space<vmem>>, %arg7: memref<1x128xf32, #tpu.memory_space<vmem>>, %arg8: memref<8x128xf32, #tpu.memory_space<vmem>>) attributes {dimension_semantics = [#tpu.dimension_semantics<parallel>], iteration_bounds = array<i64: 2>, scalar_prefetch = 0 : i64, scratch_operands = 0 : i64, tpu.core_type = #tpu.core_type<tc>, window_params = [{transform_indices = @transform_0, window_bounds = array<i64: 8, 32>}, {pipeline_mode = #tpu.pipeline_mode<synchronous>, transform_indices = @transform_1, window_bounds = array<i64: 32, 128>}, {pipeline_mode = #tpu.pipeline_mode<synchronous>, transform_indices = @transform_2, window_bounds = array<i64: 1, 128>}, {pipeline_mode = #tpu.pipeline_mode<synchronous>, transform_indices = @transform_3, window_bounds = array<i64: 1, 128>}, {pipeline_mode = #tpu.pipeline_mode<synchronous>, transform_indices = @transform_4, window_bounds = array<i64: 1, 128>}, {pipeline_mode = #tpu.pipeline_mode<synchronous>, transform_indices = @transform_5, window_bounds = array<i64: 128, 128>}, {pipeline_mode = #tpu.pipeline_mode<synchronous>, transform_indices = @transform_6, window_bounds = array<i64: 1, 128>}, {transform_indices = @transform_7, window_bounds = array<i64: 8, 128>}]} {
    %c0 = arith.constant 0 : index
    %c0_0 = arith.constant 0 : index
    %0 = vector.load %arg2[%c0, %c0_0] : memref<32x128xbf16, #tpu.memory_space<vmem>>, vector<32x128xbf16>
    %c0_1 = arith.constant 0 : index
    %c0_2 = arith.constant 0 : index
    %1 = vector.load %arg1[%c0_1, %c0_2] : memref<8x32xf32, #tpu.memory_space<vmem>>, vector<8x32xf32>
    %2 = arith.truncf %1 : vector<8x32xf32> to vector<8x32xbf16>
    %cst = arith.constant dense<0.000000e+00> : vector<8x128xf32>
    %3 = tpu.matmul %2, %0, %cst {dimension_numbers = #tpu.dot_dimension_numbers<[1], [0], [0], [1], [0, 0, 1, 1], [], []>} : vector<8x32xbf16>, vector<32x128xbf16>, vector<8x128xf32> -> vector<8x128xf32>
    %c0_3 = arith.constant 0 : index
    %c0_4 = arith.constant 0 : index
    %4 = vector.load %arg3[%c0_3, %c0_4] : memref<1x128xf32, #tpu.memory_space<vmem>>, vector<1x128xf32>
    %5 = vector.broadcast %4 : vector<1x128xf32> to vector<8x128xf32>
    %6 = arith.addf %3, %5 : vector<8x128xf32>
    %7 = math.tanh %6 : vector<8x128xf32>
    %cst_5 = arith.constant dense<0.000000e+00> : vector<8xf32>
    %8 = vector.multi_reduction <add>, %7, %cst_5 [1] : vector<8x128xf32> to vector<8xf32>
    %9 = vector.shape_cast %8 : vector<8xf32> to vector<8x1xf32>
    %cst_6 = arith.constant 3.125000e-02 : f32
    %10 = vector.broadcast %cst_6 : f32 to vector<8x1xf32>
    %11 = arith.mulf %9, %10 : vector<8x1xf32>
    %12 = arith.mulf %7, %7 : vector<8x128xf32>
    %cst_7 = arith.constant dense<0.000000e+00> : vector<8xf32>
    %13 = vector.multi_reduction <add>, %12, %cst_7 [1] : vector<8x128xf32> to vector<8xf32>
    %14 = vector.shape_cast %13 : vector<8xf32> to vector<8x1xf32>
    %cst_8 = arith.constant 3.125000e-02 : f32
    %15 = vector.broadcast %cst_8 : f32 to vector<8x1xf32>
    %16 = arith.mulf %14, %15 : vector<8x1xf32>
    %17 = arith.mulf %11, %11 : vector<8x1xf32>
    %18 = arith.subf %16, %17 : vector<8x1xf32>
    %cst_9 = arith.constant 0.000000e+00 : f32
    %19 = vector.broadcast %cst_9 : f32 to vector<8x1xf32>
    %20 = arith.maximumf %18, %19 : vector<8x1xf32>
    %21 = vector.broadcast %11 : vector<8x1xf32> to vector<8x128xf32>
    %22 = arith.subf %7, %21 : vector<8x128xf32>
    %cst_10 = arith.constant 9.99999974E-6 : f32
    %23 = vector.broadcast %cst_10 : f32 to vector<8x1xf32>
    %24 = arith.addf %20, %23 : vector<8x1xf32>
    %25 = math.rsqrt %24 : vector<8x1xf32>
    %26 = vector.broadcast %25 : vector<8x1xf32> to vector<8x128xf32>
    %27 = arith.mulf %22, %26 : vector<8x128xf32>
    %c0_11 = arith.constant 0 : index
    %c0_12 = arith.constant 0 : index
    %28 = vector.load %arg4[%c0_11, %c0_12] : memref<1x128xf32, #tpu.memory_space<vmem>>, vector<1x128xf32>
    %29 = vector.broadcast %28 : vector<1x128xf32> to vector<8x128xf32>
    %30 = arith.mulf %27, %29 : vector<8x128xf32>
    %c0_13 = arith.constant 0 : index
    %c0_14 = arith.constant 0 : index
    %31 = vector.load %arg5[%c0_13, %c0_14] : memref<1x128xf32, #tpu.memory_space<vmem>>, vector<1x128xf32>
    %32 = vector.broadcast %31 : vector<1x128xf32> to vector<8x128xf32>
    %33 = arith.addf %30, %32 : vector<8x128xf32>
    %c0_15 = arith.constant 0 : index
    %c0_16 = arith.constant 0 : index
    %34 = vector.load %arg6[%c0_15, %c0_16] : memref<128x128xbf16, #tpu.memory_space<vmem>>, vector<128x128xbf16>
    %35 = arith.truncf %33 : vector<8x128xf32> to vector<8x128xbf16>
    %cst_17 = arith.constant dense<0.000000e+00> : vector<8x128xf32>
    %36 = tpu.matmul %35, %34, %cst_17 {dimension_numbers = #tpu.dot_dimension_numbers<[1], [0], [0], [1], [0, 0, 1, 1], [], []>} : vector<8x128xbf16>, vector<128x128xbf16>, vector<8x128xf32> -> vector<8x128xf32>
    %c0_18 = arith.constant 0 : index
    %c0_19 = arith.constant 0 : index
    %37 = vector.load %arg7[%c0_18, %c0_19] : memref<1x128xf32, #tpu.memory_space<vmem>>, vector<1x128xf32>
    %38 = vector.broadcast %37 : vector<1x128xf32> to vector<8x128xf32>
    %39 = arith.addf %36, %38 : vector<8x128xf32>
    %c0_20 = arith.constant 0 : index
    %c0_21 = arith.constant 0 : index
    %40 = vector.load %arg8[%c0_20, %c0_21] : memref<8x128xf32, #tpu.memory_space<vmem>>, vector<8x128xf32>
    tpu.vector_store %arg8[%c0_20, %c0_21], %39 {strides = array<i32>} : memref<8x128xf32, #tpu.memory_space<vmem>>, vector<8x128xf32>,
    return
  }
  func.func @transform_0(%arg0: i32) -> (i32, i32) {
    %c0_i32 = arith.constant 0 : i32
    %c0_i32_0 = arith.constant 0 : i32
    return %arg0, %c0_i32 : i32, i32
  }
  func.func @transform_1(%arg0: i32) -> (i32, i32) {
    %c0_i32 = arith.constant 0 : i32
    %c0_i32_0 = arith.constant 0 : i32
    %c0_i32_1 = arith.constant 0 : i32
    return %c0_i32, %c0_i32_0 : i32, i32
  }
  func.func @transform_2(%arg0: i32) -> (i32, i32) {
    %c0_i32 = arith.constant 0 : i32
    %c0_i32_0 = arith.constant 0 : i32
    %c0_i32_1 = arith.constant 0 : i32
    return %c0_i32, %c0_i32_0 : i32, i32
  }
  func.func @transform_3(%arg0: i32) -> (i32, i32) {
    %c0_i32 = arith.constant 0 : i32
    %c0_i32_0 = arith.constant 0 : i32
    %c0_i32_1 = arith.constant 0 : i32
    return %c0_i32, %c0_i32_0 : i32, i32
  }
  func.func @transform_4(%arg0: i32) -> (i32, i32) {
    %c0_i32 = arith.constant 0 : i32
    %c0_i32_0 = arith.constant 0 : i32
    %c0_i32_1 = arith.constant 0 : i32
    return %c0_i32, %c0_i32_0 : i32, i32
  }
  func.func @transform_5(%arg0: i32) -> (i32, i32) {
    %c0_i32 = arith.constant 0 : i32
    %c0_i32_0 = arith.constant 0 : i32
    %c0_i32_1 = arith.constant 0 : i32
    return %c0_i32, %c0_i32_0 : i32, i32
  }
  func.func @transform_6(%arg0: i32) -> (i32, i32) {
    %c0_i32 = arith.constant 0 : i32
    %c0_i32_0 = arith.constant 0 : i32
    %c0_i32_1 = arith.constant 0 : i32
    return %c0_i32, %c0_i32_0 : i32, i32
  }
  func.func @transform_7(%arg0: i32) -> (i32, i32) {
    %c0_i32 = arith.constant 0 : i32
    %c0_i32_0 = arith.constant 0 : i32
    return %arg0, %c0_i32 : i32, i32
  }
}

module attributes {stable_mosaic.version = 11 : i64} {
  func.func @_poller_end_kernel(%arg0: i32, %arg1: memref<8x32xf32, #tpu.memory_space<vmem>>, %arg2: memref<32x128xbf16, #tpu.memory_space<vmem>>, %arg3: memref<1x128xf32, #tpu.memory_space<vmem>>, %arg4: memref<1x128xf32, #tpu.memory_space<vmem>>, %arg5: memref<1x128xf32, #tpu.memory_space<vmem>>, %arg6: memref<128x128xbf16, #tpu.memory_space<vmem>>, %arg7: memref<1x128xf32, #tpu.memory_space<vmem>>, %arg8: memref<8x128xf32, #tpu.memory_space<vmem>>) attributes {dimension_semantics = [#tpu.dimension_semantics<parallel>], iteration_bounds = array<i64: 2>, scalar_prefetch = 0 : i64, scratch_operands = 0 : i64, tpu.core_type = #tpu.core_type<tc>, window_params = [{transform_indices = @transform_0, window_bounds = array<i64: 8, 32>}, {pipeline_mode = #tpu.pipeline_mode<synchronous>, transform_indices = @transform_1, window_bounds = array<i64: 32, 128>}, {pipeline_mode = #tpu.pipeline_mode<synchronous>, transform_indices = @transform_2, window_bounds = array<i64: 1, 128>}, {pipeline_mode = #tpu.pipeline_mode<synchronous>, transform_indices = @transform_3, window_bounds = array<i64: 1, 128>}, {pipeline_mode = #tpu.pipeline_mode<synchronous>, transform_indices = @transform_4, window_bounds = array<i64: 1, 128>}, {pipeline_mode = #tpu.pipeline_mode<synchronous>, transform_indices = @transform_5, window_bounds = array<i64: 128, 128>}, {pipeline_mode = #tpu.pipeline_mode<synchronous>, transform_indices = @transform_6, window_bounds = array<i64: 1, 128>}, {transform_indices = @transform_7, window_bounds = array<i64: 8, 128>}]} {
    %c0 = arith.constant 0 : index
    %c0_0 = arith.constant 0 : index
    %0 = vector.load %arg2[%c0, %c0_0] : memref<32x128xbf16, #tpu.memory_space<vmem>>, vector<32x128xbf16>
    %c0_1 = arith.constant 0 : index
    %c0_2 = arith.constant 0 : index
    %1 = vector.load %arg1[%c0_1, %c0_2] : memref<8x32xf32, #tpu.memory_space<vmem>>, vector<8x32xf32>
    %2 = arith.truncf %1 : vector<8x32xf32> to vector<8x32xbf16>
    %cst = arith.constant dense<0.000000e+00> : vector<8x128xf32>
    %3 = tpu.matmul %2, %0, %cst {dimension_numbers = #tpu.dot_dimension_numbers<[1], [0], [0], [1], [0, 0, 1, 1], [], []>} : vector<8x32xbf16>, vector<32x128xbf16>, vector<8x128xf32> -> vector<8x128xf32>
    %c0_3 = arith.constant 0 : index
    %c0_4 = arith.constant 0 : index
    %4 = vector.load %arg3[%c0_3, %c0_4] : memref<1x128xf32, #tpu.memory_space<vmem>>, vector<1x128xf32>
    %5 = vector.broadcast %4 : vector<1x128xf32> to vector<8x128xf32>
    %6 = arith.addf %3, %5 : vector<8x128xf32>
    %7 = math.tanh %6 : vector<8x128xf32>
    %cst_5 = arith.constant dense<0.000000e+00> : vector<8xf32>
    %8 = vector.multi_reduction <add>, %7, %cst_5 [1] : vector<8x128xf32> to vector<8xf32>
    %9 = vector.shape_cast %8 : vector<8xf32> to vector<8x1xf32>
    %cst_6 = arith.constant 3.125000e-02 : f32
    %10 = vector.broadcast %cst_6 : f32 to vector<8x1xf32>
    %11 = arith.mulf %9, %10 : vector<8x1xf32>
    %12 = arith.mulf %7, %7 : vector<8x128xf32>
    %cst_7 = arith.constant dense<0.000000e+00> : vector<8xf32>
    %13 = vector.multi_reduction <add>, %12, %cst_7 [1] : vector<8x128xf32> to vector<8xf32>
    %14 = vector.shape_cast %13 : vector<8xf32> to vector<8x1xf32>
    %cst_8 = arith.constant 3.125000e-02 : f32
    %15 = vector.broadcast %cst_8 : f32 to vector<8x1xf32>
    %16 = arith.mulf %14, %15 : vector<8x1xf32>
    %17 = arith.mulf %11, %11 : vector<8x1xf32>
    %18 = arith.subf %16, %17 : vector<8x1xf32>
    %cst_9 = arith.constant 0.000000e+00 : f32
    %19 = vector.broadcast %cst_9 : f32 to vector<8x1xf32>
    %20 = arith.maximumf %18, %19 : vector<8x1xf32>
    %21 = vector.broadcast %11 : vector<8x1xf32> to vector<8x128xf32>
    %22 = arith.subf %7, %21 : vector<8x128xf32>
    %cst_10 = arith.constant 9.99999974E-6 : f32
    %23 = vector.broadcast %cst_10 : f32 to vector<8x1xf32>
    %24 = arith.addf %20, %23 : vector<8x1xf32>
    %25 = math.rsqrt %24 : vector<8x1xf32>
    %26 = vector.broadcast %25 : vector<8x1xf32> to vector<8x128xf32>
    %27 = arith.mulf %22, %26 : vector<8x128xf32>
    %c0_11 = arith.constant 0 : index
    %c0_12 = arith.constant 0 : index
    %28 = vector.load %arg4[%c0_11, %c0_12] : memref<1x128xf32, #tpu.memory_space<vmem>>, vector<1x128xf32>
    %29 = vector.broadcast %28 : vector<1x128xf32> to vector<8x128xf32>
    %30 = arith.mulf %27, %29 : vector<8x128xf32>
    %c0_13 = arith.constant 0 : index
    %c0_14 = arith.constant 0 : index
    %31 = vector.load %arg5[%c0_13, %c0_14] : memref<1x128xf32, #tpu.memory_space<vmem>>, vector<1x128xf32>
    %32 = vector.broadcast %31 : vector<1x128xf32> to vector<8x128xf32>
    %33 = arith.addf %30, %32 : vector<8x128xf32>
    %c0_15 = arith.constant 0 : index
    %c0_16 = arith.constant 0 : index
    %34 = vector.load %arg6[%c0_15, %c0_16] : memref<128x128xbf16, #tpu.memory_space<vmem>>, vector<128x128xbf16>
    %35 = arith.truncf %33 : vector<8x128xf32> to vector<8x128xbf16>
    %cst_17 = arith.constant dense<0.000000e+00> : vector<8x128xf32>
    %36 = tpu.matmul %35, %34, %cst_17 {dimension_numbers = #tpu.dot_dimension_numbers<[1], [0], [0], [1], [0, 0, 1, 1], [], []>} : vector<8x128xbf16>, vector<128x128xbf16>, vector<8x128xf32> -> vector<8x128xf32>
    %c0_18 = arith.constant 0 : index
    %c0_19 = arith.constant 0 : index
    %37 = vector.load %arg7[%c0_18, %c0_19] : memref<1x128xf32, #tpu.memory_space<vmem>>, vector<1x128xf32>
    %38 = vector.broadcast %37 : vector<1x128xf32> to vector<8x128xf32>
    %39 = arith.addf %36, %38 : vector<8x128xf32>
    %c0_20 = arith.constant 0 : index
    %c0_21 = arith.constant 0 : index
    %40 = vector.load %arg8[%c0_20, %c0_21] : memref<8x128xf32, #tpu.memory_space<vmem>>, vector<8x128xf32>
    tpu.vector_store %arg8[%c0_20, %c0_21], %39 {strides = array<i32>} : memref<8x128xf32, #tpu.memory_space<vmem>>, vector<8x128xf32>,
    return
  }
  func.func @transform_0(%arg0: i32) -> (i32, i32) {
    %c0_i32 = arith.constant 0 : i32
    %c0_i32_0 = arith.constant 0 : i32
    return %arg0, %c0_i32 : i32, i32
  }
  func.func @transform_1(%arg0: i32) -> (i32, i32) {
    %c0_i32 = arith.constant 0 : i32
    %c0_i32_0 = arith.constant 0 : i32
    %c0_i32_1 = arith.constant 0 : i32
    return %c0_i32, %c0_i32_0 : i32, i32
  }
  func.func @transform_2(%arg0: i32) -> (i32, i32) {
    %c0_i32 = arith.constant 0 : i32
    %c0_i32_0 = arith.constant 0 : i32
    %c0_i32_1 = arith.constant 0 : i32
    return %c0_i32, %c0_i32_0 : i32, i32
  }
  func.func @transform_3(%arg0: i32) -> (i32, i32) {
    %c0_i32 = arith.constant 0 : i32
    %c0_i32_0 = arith.constant 0 : i32
    %c0_i32_1 = arith.constant 0 : i32
    return %c0_i32, %c0_i32_0 : i32, i32
  }
  func.func @transform_4(%arg0: i32) -> (i32, i32) {
    %c0_i32 = arith.constant 0 : i32
    %c0_i32_0 = arith.constant 0 : i32
    %c0_i32_1 = arith.constant 0 : i32
    return %c0_i32, %c0_i32_0 : i32, i32
  }
  func.func @transform_5(%arg0: i32) -> (i32, i32) {
    %c0_i32 = arith.constant 0 : i32
    %c0_i32_0 = arith.constant 0 : i32
    %c0_i32_1 = arith.constant 0 : i32
    return %c0_i32, %c0_i32_0 : i32, i32
  }
  func.func @transform_6(%arg0: i32) -> (i32, i32) {
    %c0_i32 = arith.constant 0 : i32
    %c0_i32_0 = arith.constant 0 : i32
    %c0_i32_1 = arith.constant 0 : i32
    return %c0_i32, %c0_i32_0 : i32, i32
  }
  func.func @transform_7(%arg0: i32) -> (i32, i32) {
    %c0_i32 = arith.constant 0 : i32
    %c0_i32_0 = arith.constant 0 : i32
    return %arg0, %c0_i32 : i32, i32
  }
}

</mosaic_0001>

<llo_original>
// kernel: poller_end_layer.1
$region0: #{poller_end_layer.1}
  #allocation0 [shape = 'u32[]', space=smem, size = 0x4, offset = 0x4, fixed_abs, tag = 'smem constant byte address 0x4 - core index']
  #allocation1 [shape = 'u32[144,128]{1,0:T(1,128)}', space=vmem, size = 0x12000, scoped, tag = 'internal scratch']
  %s0 = inlined_call_operand.vmem [shape: f32[16,32], index: 0, kind: input, shape index: {}]
  %s1 = inlined_call_operand.vmem [shape: bf16[32,128], index: 1, kind: input, shape index: {}]
  %s2 = inlined_call_operand.vmem [shape: f32[1,128], index: 2, kind: input, shape index: {}]
  %s3 = inlined_call_operand.vmem [shape: f32[1,128], index: 3, kind: input, shape index: {}]
  %s4 = inlined_call_operand.vmem [shape: f32[1,128], index: 4, kind: input, shape index: {}]
  %s5 = inlined_call_operand.vmem [shape: bf16[128,128], index: 5, kind: input, shape index: {}]
  %s6 = inlined_call_operand.vmem [shape: f32[1,128], index: 6, kind: input, shape index: {}]
  %s7 = inlined_call_operand.vmem [shape: f32[16,128], index: 7, kind: output, shape index: {}]
  %s8 = sld [smem:[#allocation0]]
  $region61: #{poller_end_layer.1} parent=0
    _
  %s10 = ssub.s32 1, %s8
  %s11 = scalar_select 0, %s10, %s8
  loop: start=0, step=1, limit=4
  $region2: #{poller_end_layer.1} parent=0 // loop_pre_header
    _
  $region3: #{poller_end_layer.1} parent=0 // loop_header
    %s13 = sphi 0, %s17
    %p14 = scmp.ge.s32.totalorder %s13, 4
    %s23 = sphi 0, %s25
    %s26 = sphi 0, %s23
    %s27 = sphi 0, %s26
    %s43 = sphi 0, %s27
    %s47 = sphi 0, %s47
    %s49 = sphi 0, %s47
    %s50 = sphi 0, %s49
    %s64 = sphi 0, %s50
    %s68 = sphi 0, %s68
    %s70 = sphi 0, %s68
    %s71 = sphi 0, %s70
    %s85 = sphi 0, %s71
    %s89 = sphi 0, %s89
    %s91 = sphi 0, %s89
    %s92 = sphi 0, %s91
    %s106 = sphi 0, %s92
    %s110 = sphi 0, %s110
    %s112 = sphi 0, %s110
    %s113 = sphi 0, %s112
    %s127 = sphi 0, %s113
    %s131 = sphi 0, %s131
    %s133 = sphi 0, %s131
    %s134 = sphi 0, %s133
    %s148 = sphi 0, %s134
    %s152 = sphi 0, %s152
    %s154 = sphi 0, %s152
    %s155 = sphi 0, %s154
    %s169 = sphi 0, %s155
    %s175 = sphi 0, %s177
    %s178 = sphi 0, %s175
    %s179 = sphi 0, %s178
    %s195 = sphi 0, %s179
  $region4: #{poller_end_layer.1} parent=0 // loop_header_branch
    %16 = sbr.rel (%p14) target = $region8
  $region5: #{poller_end_layer.1} parent=0 // loop_body
    %s18 = ssub.s32 %s13, 1
    %s19 = ssub.s32 %s13, 2
    %s20 = sadd.s32 %s13, 1
    %s21 = ssub.s32 %s13, %s20
    %p22 = scmp.eq.s32.totalorder %s21, 0
    %s24 = sadd.s32 %s23, 1
    %s25 = scalar_select %p22, %s23, %s24
    %p28 = pneg %p22
    %p29 = scmp.eq.s32.totalorder %s13, 1
    %p30 = por %p28, %p29
    %p31 = scmp.ne.s32.totalorder %s23, %s26
    %p32 = scmp.eq.s32.totalorder %s13, 0
    %p33 = por %p31, %p32
    %p34 = scmp.ne.s32.totalorder %s23, %s26
    %p35 = scmp.eq.s32.totalorder %s18, 1
    %p36 = por %p34, %p35
    %p37 = scmp.ne.s32.totalorder %s26, %s27
    %p38 = scmp.eq.s32.totalorder %s18, 0
    %p39 = por %p37, %p38
    %p40 = scmp.ne.s32.totalorder %s26, %s27
    %p41 = scmp.eq.s32.totalorder %s19, 1
    %p42 = por %p40, %p41
    %p44 = scmp.ne.s32.totalorder %s27, %s43
    %p45 = scmp.eq.s32.totalorder %s19, 0
    %p46 = por %p44, %p45
    %s48 = sadd.s32 %s47, 1
    %p51 = scmp.eq.s32.totalorder %s13, 1
    %p52 = scmp.ne.s32.totalorder %s47, %s49
    %p53 = scmp.eq.s32.totalorder %s13, 0
    %p54 = por %p52, %p53
    %p55 = scmp.ne.s32.totalorder %s47, %s49
    %p56 = scmp.eq.s32.totalorder %s18, 1
    %p57 = por %p55, %p56
    %p58 = scmp.ne.s32.totalorder %s49, %s50
    %p59 = scmp.eq.s32.totalorder %s18, 0
    %p60 = por %p58, %p59
    %p61 = scmp.ne.s32.totalorder %s49, %s50
    %p62 = scmp.eq.s32.totalorder %s19, 1
    %p63 = por %p61, %p62
    %p65 = scmp.ne.s32.totalorder %s50, %s64
    %p66 = scmp.eq.s32.totalorder %s19, 0
    %p67 = por %p65, %p66
    %s69 = sadd.s32 %s68, 1
    %p72 = scmp.eq.s32.totalorder %s13, 1
    %p73 = scmp.ne.s32.totalorder %s68, %s70
    %p74 = scmp.eq.s32.totalorder %s13, 0
    %p75 = por %p73, %p74
    %p76 = scmp.ne.s32.totalorder %s68, %s70
    %p77 = scmp.eq.s32.totalorder %s18, 1
    %p78 = por %p76, %p77
    %p79 = scmp.ne.s32.totalorder %s70, %s71
    %p80 = scmp.eq.s32.totalorder %s18, 0
    %p81 = por %p79, %p80
    %p82 = scmp.ne.s32.totalorder %s70, %s71
    %p83 = scmp.eq.s32.totalorder %s19, 1
    %p84 = por %p82, %p83
    %p86 = scmp.ne.s32.totalorder %s71, %s85
    %p87 = scmp.eq.s32.totalorder %s19, 0
    %p88 = por %p86, %p87
    %s90 = sadd.s32 %s89, 1
    %p93 = scmp.eq.s32.totalorder %s13, 1
    %p94 = scmp.ne.s32.totalorder %s89, %s91
    %p95 = scmp.eq.s32.totalorder %s13, 0
    %p96 = por %p94, %p95
    %p97 = scmp.ne.s32.totalorder %s89, %s91
    %p98 = scmp.eq.s32.totalorder %s18, 1
    %p99 = por %p97, %p98
    %p100 = scmp.ne.s32.totalorder %s91, %s92
    %p101 = scmp.eq.s32.totalorder %s18, 0
    %p102 = por %p100, %p101
    %p103 = scmp.ne.s32.totalorder %s91, %s92
    %p104 = scmp.eq.s32.totalorder %s19, 1
    %p105 = por %p103, %p104
    %p107 = scmp.ne.s32.totalorder %s92, %s106
    %p108 = scmp.eq.s32.totalorder %s19, 0
    %p109 = por %p107, %p108
    %s111 = sadd.s32 %s110, 1
    %p114 = scmp.eq.s32.totalorder %s13, 1
    %p115 = scmp.ne.s32.totalorder %s110, %s112
    %p116 = scmp.eq.s32.totalorder %s13, 0
    %p117 = por %p115, %p116
    %p118 = scmp.ne.s32.totalorder %s110, %s112
    %p119 = scmp.eq.s32.totalorder %s18, 1
    %p120 = por %p118, %p119
    %p121 = scmp.ne.s32.totalorder %s112, %s113
    %p122 = scmp.eq.s32.totalorder %s18, 0
    %p123 = por %p121, %p122
    %p124 = scmp.ne.s32.totalorder %s112, %s113
    %p125 = scmp.eq.s32.totalorder %s19, 1
    %p126 = por %p124, %p125
    %p128 = scmp.ne.s32.totalorder %s113, %s127
    %p129 = scmp.eq.s32.totalorder %s19, 0
    %p130 = por %p128, %p129
    %s132 = sadd.s32 %s131, 1
    %p135 = scmp.eq.s32.totalorder %s13, 1
    %p136 = scmp.ne.s32.totalorder %s131, %s133
    %p137 = scmp.eq.s32.totalorder %s13, 0
    %p138 = por %p136, %p137
    %p139 = scmp.ne.s32.totalorder %s131, %s133
    %p140 = scmp.eq.s32.totalorder %s18, 1
    %p141 = por %p139, %p140
    %p142 = scmp.ne.s32.totalorder %s133, %s134
    %p143 = scmp.eq.s32.totalorder %s18, 0
    %p144 = por %p142, %p143
    %p145 = scmp.ne.s32.totalorder %s133, %s134
    %p146 = scmp.eq.s32.totalorder %s19, 1
    %p147 = por %p145, %p146
    %p149 = scmp.ne.s32.totalorder %s134, %s148
    %p150 = scmp.eq.s32.totalorder %s19, 0
    %p151 = por %p149, %p150
    %s153 = sadd.s32 %s152, 1
    %p156 = scmp.eq.s32.totalorder %s13, 1
    %p157 = scmp.ne.s32.totalorder %s152, %s154
    %p158 = scmp.eq.s32.totalorder %s13, 0
    %p159 = por %p157, %p158
    %p160 = scmp.ne.s32.totalorder %s152, %s154
    %p161 = scmp.eq.s32.totalorder %s18, 1
    %p162 = por %p160, %p161
    %p163 = scmp.ne.s32.totalorder %s154, %s155
    %p164 = scmp.eq.s32.totalorder %s18, 0
    %p165 = por %p163, %p164
    %p166 = scmp.ne.s32.totalorder %s154, %s155
    %p167 = scmp.eq.s32.totalorder %s19, 1
    %p168 = por %p166, %p167
    %p170 = scmp.ne.s32.totalorder %s155, %s169
    %p171 = scmp.eq.s32.totalorder %s19, 0
    %p172 = por %p170, %p171
    %s173 = ssub.s32 %s13, %s20
    %p174 = scmp.eq.s32.totalorder %s173, 0
    %s176 = sadd.s32 %s175, 1
    %s177 = scalar_select %p174, %s175, %s176
    %p180 = pneg %p174
    %p181 = scmp.eq.s32.totalorder %s13, 1
    %p182 = por %p180, %p181
    %p183 = scmp.ne.s32.totalorder %s175, %s178
    %p184 = scmp.eq.s32.totalorder %s13, 0
    %p185 = por %p183, %p184
    %p186 = scmp.ne.s32.totalorder %s175, %s178
    %p187 = scmp.eq.s32.totalorder %s18, 1
    %p188 = por %p186, %p187
    %p189 = scmp.ne.s32.totalorder %s178, %s179
    %p190 = scmp.eq.s32.totalorder %s18, 0
    %p191 = por %p189, %p190
    %p192 = scmp.ne.s32.totalorder %s178, %s179
    %p193 = scmp.eq.s32.totalorder %s19, 1
    %p194 = por %p192, %p193
    %p196 = scmp.ne.s32.totalorder %s179, %s195
    %p197 = scmp.eq.s32.totalorder %s19, 0
    %p198 = por %p196, %p197
    %p199 = scmp.le.s32.totalorder 1, %s13
    %p200 = scmp.lt.s32.totalorder %s13, 3
    %p201 = pnand %p199, %p200
    %p202 = pneg %p201
    // Predicated region
    $region9: #{poller_end_layer.1} parent=5 // pred_check
      _
    $region10: #{poller_end_layer.1} parent=5 // pred_check_branch
      %204 = sbr.rel (%p201) target = $region12
    $region11: #{poller_end_layer.1} parent=5 // pred_region
      %s205 = ssub.s32 %s13, 1
      // Predicated region
      $region13: #{poller_end_layer.1} parent=11 // pred_check
        %p206 = pneg %p60
      $region14: #{poller_end_layer.1} parent=11 // pred_check_branch
        %208 = sbr.rel (%p206) target = $region16
      $region15: #{poller_end_layer.1} parent=11 // pred_region
        _
      $region16: #{poller_end_layer.1} parent=11 // pred_fallthru
        _
      // Predicated region
      $region17: #{poller_end_layer.1} parent=11 // pred_check
        %p209 = pneg %p81
      $region18: #{poller_end_layer.1} parent=11 // pred_check_branch
        %211 = sbr.rel (%p209) target = $region20
      $region19: #{poller_end_layer.1} parent=11 // pred_region
        _
      $region20: #{poller_end_layer.1} parent=11 // pred_fallthru
        _
      // Predicated region
      $region21: #{poller_end_layer.1} parent=11 // pred_check
        %p212 = pneg %p102
      $region22: #{poller_end_layer.1} parent=11 // pred_check_branch
        %214 = sbr.rel (%p212) target = $region24
      $region23: #{poller_end_layer.1} parent=11 // pred_region
        _
      $region24: #{poller_end_layer.1} parent=11 // pred_fallthru
        _
      // Predicated region
      $region25: #{poller_end_layer.1} parent=11 // pred_check
        %p215 = pneg %p123
      $region26: #{poller_end_layer.1} parent=11 // pred_check_branch
        %217 = sbr.rel (%p215) target = $region28
      $region27: #{poller_end_layer.1} parent=11 // pred_region
        _
      $region28: #{poller_end_layer.1} parent=11 // pred_fallthru
        _
      // Predicated region
      $region29: #{poller_end_layer.1} parent=11 // pred_check
        %p218 = pneg %p144
      $region30: #{poller_end_layer.1} parent=11 // pred_check_branch
        %220 = sbr.rel (%p218) target = $region32
      $region31: #{poller_end_layer.1} parent=11 // pred_region
        _
      $region32: #{poller_end_layer.1} parent=11 // pred_fallthru
        _
      // Predicated region
      $region33: #{poller_end_layer.1} parent=11 // pred_check
        %p221 = pneg %p165
      $region34: #{poller_end_layer.1} parent=11 // pred_check_branch
        %223 = sbr.rel (%p221) target = $region36
      $region35: #{poller_end_layer.1} parent=11 // pred_region
        _
      $region36: #{poller_end_layer.1} parent=11 // pred_fallthru
        _
    $region12: #{poller_end_layer.1} parent=5 // pred_fallthru
      _
    %p224 = scmp.lt.s32.totalorder %s13, 2
    // Predicated region
    $region37: #{poller_end_layer.1} parent=5 // pred_check
      %p225 = pneg %p224
    $region38: #{poller_end_layer.1} parent=5 // pred_check_branch
      %227 = sbr.rel (%p225) target = $region40
    $region39: #{poller_end_layer.1} parent=5 // pred_region
      // Predicated region
      $region41: #{poller_end_layer.1} parent=39 // pred_check
        %p228 = pneg %p33
      $region42: #{poller_end_layer.1} parent=39 // pred_check_branch
        %230 = sbr.rel (%p228) target = $region44
      $region43: #{poller_end_layer.1} parent=39 // pred_region
        %p231 = scmp.lt.s32.totalorder %s13, 1
        %s232 = scalar_select %p231, %s13, 1
        %s233 = smul.addr %s232, 8
        %s234 = scalar_lea.vmem %s0, %s233
      $region44: #{poller_end_layer.1} parent=39 // pred_fallthru
        _
    $region40: #{poller_end_layer.1} parent=5 // pred_fallthru
      _
    %p235 = scmp.le.s32.totalorder 1, %s13
    %p236 = scmp.lt.s32.totalorder %s13, 3
    %p237 = pnand %p235, %p236
    %p238 = pneg %p237
    // Predicated region
    $region45: #{poller_end_layer.1} parent=5 // pred_check
      _
    $region46: #{poller_end_layer.1} parent=5 // pred_check_branch
      %240 = sbr.rel (%p237) target = $region48
    $region47: #{poller_end_layer.1} parent=5 // pred_region
      %s241 = ssub.s32 %s13, 1
      %p242 = scmp.lt.s32.totalorder %s18, 1
      %s243 = scalar_select %p242, %s18, 1
      %s244 = smul.addr %s243, 8
      %s245 = scalar_lea.vmem %s0, %s244
      %p246 = pneg %p39
      %p247 = pneg %p36
      %p248 = pneg %p60
      %p249 = pneg %p57
      %p250 = pneg %p81
      %p251 = pneg %p78
      %p252 = pneg %p102
      %p253 = pneg %p99
      %p254 = pneg %p123
      %p255 = pneg %p120
      %p256 = pneg %p144
      %p257 = pneg %p141
      %p258 = pneg %p165
      %p259 = pneg %p162
      %p260 = pneg %p191
      %p261 = pneg %p188
      %p262 = scmp.lt.s32.totalorder %s18, 1
      %s263 = scalar_select %p262, %s18, 1
      %s264 = smul.addr %s263, 8
      %s265 = scalar_lea.vmem %s7, %s264
      %p266 = scmp.lt.s32.totalorder %s18, 1
      %s267 = scalar_select %p266, %s18, 1
      %s268 = smul.addr %s267, 8
      %s269 = scalar_lea.vmem %s0, %s268
      %p270 = scmp.lt.s32.totalorder %s18, 1
      %s271 = scalar_select %p270, %s18, 1
      %s272 = smul.addr %s271, 8
      %s273 = scalar_lea.vmem %s7, %s272
      %v275 = vld [vmem:[%s1] sm:$0xf]
      %v276 = vld [vmem:[%s1 + $0x4] sm:$0xf]
      %v277 = vld [vmem:[%s1 + $0x8] sm:$0xf]
      %v278 = vld [vmem:[%s1 + $0xc] sm:$0xf]
      %v279 = vld [vmem:[%s269] sm:$0xff]
      %v280 = vpack.c.bf16 %v279, %v279
      %v281 = vld [vmem:[%s2] sm:$0x1]
      %v283 = vlaneseq
      %v284 = vshrl.u32 %v283, 7
      %v285 = vsub.s32 0, %v284
      %v286 = vrot.slane %v281, %v285
      %v292 = vunpack.c.l.b16 %v275
      %v293 = vunpack.c.l.b16 %v276
      %v294 = vunpack.c.l.b16 %v277
      %v295 = vunpack.c.l.b16 %v278
      %v296 = vpack.c.b16 %v293, %v292
      %v297 = vpack.c.b16 %v295, %v294
      %vm300 = vcmask 261120
      %v302 = vsel %vm300, %v280, 0
      %304 = vmatprep.subr.bf16.mxu0 0
      %305 = vmatpush1.bf16.msra.mxu0 %v296
      %306 = vmatprep.subr.bf16.mxu0 0
      %307 = vmatpush1.bf16.msra.mxu0 %v297
      %308 = vmatprep.subr.bf16.mxu0 0
      %309 = vmatpush1.bf16.msra.mxu0 0
      %310 = vmatprep.subr.bf16.mxu0 0
      %311 = vmatpush1.bf16.msra.mxu0 0
      %312 = vmatprep.subr.bf16.mxu0 0
      %313 = vmatpush1.bf16.msra.mxu0 0
      %314 = vmatprep.subr.bf16.mxu0 0
      %315 = vmatpush1.bf16.msra.mxu0 0
      %316 = vmatprep.subr.bf16.mxu0 0
      %317 = vmatpush1.bf16.msra.mxu0 0
      %318 = vmatprep.subr.bf16.mxu0 0
      %319 = vmatpush1.bf16.msra.mxu0 0
      %320 = vmatprep.subr.bf16.mxu0 0
      %321 = vmatpush1.bf16.msra.mxu0 0
      %322 = vmatprep.subr.bf16.mxu0 0
      %323 = vmatpush1.bf16.msra.mxu0 0
      %324 = vmatprep.subr.bf16.mxu0 0
      %325 = vmatpush1.bf16.msra.mxu0 0
      %326 = vmatprep.subr.bf16.mxu0 0
      %327 = vmatpush1.bf16.msra.mxu0 0
      %328 = vmatprep.subr.bf16.mxu0 0
      %329 = vmatpush1.bf16.msra.mxu0 0
      %330 = vmatprep.subr.bf16.mxu0 0
      %331 = vmatpush1.bf16.msra.mxu0 0
      %332 = vmatprep.subr.bf16.mxu0 0
      %333 = vmatpush1.bf16.msra.mxu0 0
      %334 = vmatprep.subr.bf16.mxu0 0
      %335 = vmatpush1.bf16.msra.mxu0 0
      %336 = vmatprep.mubr.bf16.mxu0 0
      %337 = vmatmul.mubr.bf16.gmra.mrb[0].mxu0 %v302
      %v338 = vpop.f32.mrb[0].mxu0
      %v339 = vadd.f32 %v286, %v338
      %v340 = vpop.f32.mrb[0].mxu0
      %v341 = vpop.f32.mrb[0].mxu0
      %v342 = vpop.f32.mrb[0].mxu0
      %343 = vdwg.mxu0
      %v344 = vtanh.pop %v339
      %345 = vadd.xlane.f32.xlu0 %v344
      %v346 = vpop.xlane.xlu0 %345
      %v347 = vmul.f32 %v346, 0.03125
      %v348 = vmul.f32 %v344, %v344
      %349 = vadd.xlane.f32.xlu0 %v348
      %v350 = vpop.xlane.xlu0 %349
      %v351 = vmul.f32 %v350, 0.03125
      %v352 = vmul.f32 %v347, %v347
      %v353 = vsub.f32 %v351, %v352
      %v354 = vmax.f32 %v353, 0.0
      %v355 = vsub.f32 %v344, %v347
      %v356 = vadd.f32 %v354, 1e-05
      %v357 = vrsqrt.pop %v356
      %v358 = vmul.f32 %v355, %v357
      %v359 = vld [vmem:[%s3] sm:$0x1]
      %v361 = vlaneseq
      %v362 = vshrl.u32 %v361, 7
      %v363 = vsub.s32 0, %v362
      %v364 = vrot.slane %v359, %v363
      %v366 = vmul.f32 %v358, %v364
      %v367 = vld [vmem:[%s4] sm:$0x1]
      %v369 = vlaneseq
      %v370 = vshrl.u32 %v369, 7
      %v371 = vsub.s32 0, %v370
      %v372 = vrot.slane %v367, %v371
      %v374 = vadd.f32 %v366, %v372
      %v375 = vld [vmem:[%s5] sm:$0xf]
      %v376 = vld [vmem:[%s5 + $0x4] sm:$0xf]
      %v377 = vld [vmem:[%s5 + $0x8] sm:$0xf]
      %v378 = vld [vmem:[%s5 + $0xc] sm:$0xf]
      %v379 = vld [vmem:[%s5 + $0x10] sm:$0xf]
      %v380 = vld [vmem:[%s5 + $0x14] sm:$0xf]
      %v381 = vld [vmem:[%s5 + $0x18] sm:$0xf]
      %v382 = vld [vmem:[%s5 + $0x1c] sm:$0xf]
      %v383 = vld [vmem:[%s5 + $0x20] sm:$0xf]
      %v384 = vld [vmem:[%s5 + $0x24] sm:$0xf]
      %v385 = vld [vmem:[%s5 + $0x28] sm:$0xf]
      %v386 = vld [vmem:[%s5 + $0x2c] sm:$0xf]
      %v387 = vld [vmem:[%s5 + $0x30] sm:$0xf]
      %v388 = vld [vmem:[%s5 + $0x34] sm:$0xf]
      %v389 = vld [vmem:[%s5 + $0x38] sm:$0xf]
      %v390 = vld [vmem:[%s5 + $0x3c] sm:$0xf]
      %v391 = vpack.c.bf16 %v374, %v374
      %v392 = vld [vmem:[%s6] sm:$0x1]
      %v394 = vlaneseq
      %v395 = vshrl.u32 %v394, 7
      %v396 = vsub.s32 0, %v395
      %v397 = vrot.slane %v392, %v396
      %v415 = vunpack.c.l.b16 %v375
      %v416 = vunpack.c.l.b16 %v376
      %v417 = vunpack.c.l.b16 %v377
      %v418 = vunpack.c.l.b16 %v378
      %v419 = vunpack.c.l.b16 %v379
      %v420 = vunpack.c.l.b16 %v380
      %v421 = vunpack.c.l.b16 %v381
      %v422 = vunpack.c.l.b16 %v382
      %v423 = vunpack.c.l.b16 %v383
      %v424 = vunpack.c.l.b16 %v384
      %v425 = vunpack.c.l.b16 %v385
      %v426 = vunpack.c.l.b16 %v386
      %v427 = vunpack.c.l.b16 %v387
      %v428 = vunpack.c.l.b16 %v388
      %v429 = vunpack.c.l.b16 %v389
      %v430 = vunpack.c.l.b16 %v390
      %v431 = vpack.c.b16 %v416, %v415
      %v432 = vpack.c.b16 %v418, %v417
      %v433 = vpack.c.b16 %v420, %v419
      %v434 = vpack.c.b16 %v422, %v421
      %v435 = vpack.c.b16 %v424, %v423
      %v436 = vpack.c.b16 %v426, %v425
      %v437 = vpack.c.b16 %v428, %v427
      %v438 = vpack.c.b16 %v430, %v429
      %447 = vmatprep.subr.bf16.mxu0 0
      %448 = vmatpush1.bf16.msra.mxu0 %v431
      %449 = vmatprep.subr.bf16.mxu0 0
      %450 = vmatpush1.bf16.msra.mxu0 %v432
      %451 = vmatprep.subr.bf16.mxu0 0
      %452 = vmatpush1.bf16.msra.mxu0 %v433
      %453 = vmatprep.subr.bf16.mxu0 0
      %454 = vmatpush1.bf16.msra.mxu0 %v434
      %455 = vmatprep.subr.bf16.mxu0 0
      %456 = vmatpush1.bf16.msra.mxu0 %v435
      %457 = vmatprep.subr.bf16.mxu0 0
      %458 = vmatpush1.bf16.msra.mxu0 %v436
      %459 = vmatprep.subr.bf16.mxu0 0
      %460 = vmatpush1.bf16.msra.mxu0 %v437
      %461 = vmatprep.subr.bf16.mxu0 0
      %462 = vmatpush1.bf16.msra.mxu0 %v438
      %463 = vmatprep.subr.bf16.mxu0 0
      %464 = vmatpush1.bf16.msra.mxu0 0
      %465 = vmatprep.subr.bf16.mxu0 0
      %466 = vmatpush1.bf16.msra.mxu0 0
      %467 = vmatprep.subr.bf16.mxu0 0
      %468 = vmatpush1.bf16.msra.mxu0 0
      %469 = vmatprep.subr.bf16.mxu0 0
      %470 = vmatpush1.bf16.msra.mxu0 0
      %471 = vmatprep.subr.bf16.mxu0 0
      %472 = vmatpush1.bf16.msra.mxu0 0
      %473 = vmatprep.subr.bf16.mxu0 0
      %474 = vmatpush1.bf16.msra.mxu0 0
      %475 = vmatprep.subr.bf16.mxu0 0
      %476 = vmatpush1.bf16.msra.mxu0 0
      %477 = vmatprep.subr.bf16.mxu0 0
      %478 = vmatpush1.bf16.msra.mxu0 0
      %479 = vmatprep.mubr.bf16.mxu0 0
      %480 = vmatmul.mubr.bf16.gmra.mrb[0].mxu0 %v391
      %v481 = vpop.f32.mrb[0].mxu0
      %v482 = vadd.f32 %v397, %v481
      %v483 = vpop.f32.mrb[0].mxu0
      %v484 = vpop.f32.mrb[0].mxu0
      %v485 = vpop.f32.mrb[0].mxu0
      %486 = vdwg.mxu0
      %487 = vst [vmem:[%s273] sm:$0xff] %v482
      %p488 = scmp.lt.s32.totalorder %s18, 1
      %s489 = scalar_select %p488, %s18, 1
      %s490 = smul.addr %s489, 8
      %s491 = scalar_lea.vmem %s7, %s490
      // Predicated region
      $region49: #{poller_end_layer.1} parent=47 // pred_check
        %p492 = pneg %p188
      $region50: #{poller_end_layer.1} parent=47 // pred_check_branch
        %494 = sbr.rel (%p492) target = $region52
      $region51: #{poller_end_layer.1} parent=47 // pred_region
        _
      $region52: #{poller_end_layer.1} parent=47 // pred_fallthru
        _
    $region48: #{poller_end_layer.1} parent=5 // pred_fallthru
      _
    %p495 = scmp.le.s32.totalorder 2, %s13
    // Predicated region
    $region53: #{poller_end_layer.1} parent=5 // pred_check
      %p496 = pneg %p495
    $region54: #{poller_end_layer.1} parent=5 // pred_check_branch
      %498 = sbr.rel (%p496) target = $region56
    $region55: #{poller_end_layer.1} parent=5 // pred_region
      %s499 = ssub.s32 %s13, 2
      // Predicated region
      $region57: #{poller_end_layer.1} parent=55 // pred_check
        %p500 = pneg %p194
      $region58: #{poller_end_layer.1} parent=55 // pred_check_branch
        %502 = sbr.rel (%p500) target = $region60
      $region59: #{poller_end_layer.1} parent=55 // pred_region
        %p503 = scmp.lt.s32.totalorder %s19, 1
        %s504 = scalar_select %p503, %s19, 1
        %s505 = smul.addr %s504, 8
        %s506 = scalar_lea.vmem %s7, %s505
      $region60: #{poller_end_layer.1} parent=55 // pred_fallthru
        _
    $region56: #{poller_end_layer.1} parent=5 // pred_fallthru
      _
  $region6: #{poller_end_layer.1} parent=0 // loop_footer
    %s17 = sadd.s32 1, %s13
  $region7: #{poller_end_layer.1} parent=0 // loop_footer_branch
    %12 = sbr.rel target = $region3
  $region8: #{poller_end_layer.1} parent=0 // loop_exit
    _

// kernel: poller_end_layer.1
$region0: #{poller_end_layer.1}
  #allocation0 [shape = 'u32[]', space=smem, size = 0x4, offset = 0x4, fixed_abs, tag = 'smem constant byte address 0x4 - core index']
  #allocation1 [shape = 'u32[144,128]{1,0:T(1,128)}', space=vmem, size = 0x12000, scoped, tag = 'internal scratch']
  %s0 = inlined_call_operand.vmem [shape: f32[16,32], index: 0, kind: input, shape index: {}]
  %s1 = inlined_call_operand.vmem [shape: bf16[32,128], index: 1, kind: input, shape index: {}]
  %s2 = inlined_call_operand.vmem [shape: f32[1,128], index: 2, kind: input, shape index: {}]
  %s3 = inlined_call_operand.vmem [shape: f32[1,128], index: 3, kind: input, shape index: {}]
  %s4 = inlined_call_operand.vmem [shape: f32[1,128], index: 4, kind: input, shape index: {}]
  %s5 = inlined_call_operand.vmem [shape: bf16[128,128], index: 5, kind: input, shape index: {}]
  %s6 = inlined_call_operand.vmem [shape: f32[1,128], index: 6, kind: input, shape index: {}]
  %s7 = inlined_call_operand.vmem [shape: f32[16,128], index: 7, kind: output, shape index: {}]
  %s8 = sld [smem:[#allocation0]]
  $region61: #{poller_end_layer.1} parent=0
    _
  %s10 = ssub.s32 1, %s8
  %s11 = scalar_select 0, %s10, %s8
  loop: start=0, step=1, limit=4
  $region2: #{poller_end_layer.1} parent=0 // loop_pre_header
    _
  $region3: #{poller_end_layer.1} parent=0 // loop_header
    %s13 = sphi 0, %s17
    %p14 = scmp.ge.s32.totalorder %s13, 4
    %s23 = sphi 0, %s25
    %s26 = sphi 0, %s23
    %s27 = sphi 0, %s26
    %s43 = sphi 0, %s27
    %s47 = sphi 0, %s47
    %s49 = sphi 0, %s47
    %s50 = sphi 0, %s49
    %s64 = sphi 0, %s50
    %s68 = sphi 0, %s68
    %s70 = sphi 0, %s68
    %s71 = sphi 0, %s70
    %s85 = sphi 0, %s71
    %s89 = sphi 0, %s89
    %s91 = sphi 0, %s89
    %s92 = sphi 0, %s91
    %s106 = sphi 0, %s92
    %s110 = sphi 0, %s110
    %s112 = sphi 0, %s110
    %s113 = sphi 0, %s112
    %s127 = sphi 0, %s113
    %s131 = sphi 0, %s131
    %s133 = sphi 0, %s131
    %s134 = sphi 0, %s133
    %s148 = sphi 0, %s134
    %s152 = sphi 0, %s152
    %s154 = sphi 0, %s152
    %s155 = sphi 0, %s154
    %s169 = sphi 0, %s155
    %s175 = sphi 0, %s177
    %s178 = sphi 0, %s175
    %s179 = sphi 0, %s178
    %s195 = sphi 0, %s179
  $region4: #{poller_end_layer.1} parent=0 // loop_header_branch
    %16 = sbr.rel (%p14) target = $region8
  $region5: #{poller_end_layer.1} parent=0 // loop_body
    %s18 = ssub.s32 %s13, 1
    %s19 = ssub.s32 %s13, 2
    %s20 = sadd.s32 %s13, 1
    %s21 = ssub.s32 %s13, %s20
    %p22 = scmp.eq.s32.totalorder %s21, 0
    %s24 = sadd.s32 %s23, 1
    %s25 = scalar_select %p22, %s23, %s24
    %p28 = pneg %p22
    %p29 = scmp.eq.s32.totalorder %s13, 1
    %p30 = por %p28, %p29
    %p31 = scmp.ne.s32.totalorder %s23, %s26
    %p32 = scmp.eq.s32.totalorder %s13, 0
    %p33 = por %p31, %p32
    %p34 = scmp.ne.s32.totalorder %s23, %s26
    %p35 = scmp.eq.s32.totalorder %s18, 1
    %p36 = por %p34, %p35
    %p37 = scmp.ne.s32.totalorder %s26, %s27
    %p38 = scmp.eq.s32.totalorder %s18, 0
    %p39 = por %p37, %p38
    %p40 = scmp.ne.s32.totalorder %s26, %s27
    %p41 = scmp.eq.s32.totalorder %s19, 1
    %p42 = por %p40, %p41
    %p44 = scmp.ne.s32.totalorder %s27, %s43
    %p45 = scmp.eq.s32.totalorder %s19, 0
    %p46 = por %p44, %p45
    %s48 = sadd.s32 %s47, 1
    %p51 = scmp.eq.s32.totalorder %s13, 1
    %p52 = scmp.ne.s32.totalorder %s47, %s49
    %p53 = scmp.eq.s32.totalorder %s13, 0
    %p54 = por %p52, %p53
    %p55 = scmp.ne.s32.totalorder %s47, %s49
    %p56 = scmp.eq.s32.totalorder %s18, 1
    %p57 = por %p55, %p56
    %p58 = scmp.ne.s32.totalorder %s49, %s50
    %p59 = scmp.eq.s32.totalorder %s18, 0
    %p60 = por %p58, %p59
    %p61 = scmp.ne.s32.totalorder %s49, %s50
    %p62 = scmp.eq.s32.totalorder %s19, 1
    %p63 = por %p61, %p62
    %p65 = scmp.ne.s32.totalorder %s50, %s64
    %p66 = scmp.eq.s32.totalorder %s19, 0
    %p67 = por %p65, %p66
    %s69 = sadd.s32 %s68, 1
    %p72 = scmp.eq.s32.totalorder %s13, 1
    %p73 = scmp.ne.s32.totalorder %s68, %s70
    %p74 = scmp.eq.s32.totalorder %s13, 0
    %p75 = por %p73, %p74
    %p76 = scmp.ne.s32.totalorder %s68, %s70
    %p77 = scmp.eq.s32.totalorder %s18, 1
    %p78 = por %p76, %p77
    %p79 = scmp.ne.s32.totalorder %s70, %s71
    %p80 = scmp.eq.s32.totalorder %s18, 0
    %p81 = por %p79, %p80
    %p82 = scmp.ne.s32.totalorder %s70, %s71
    %p83 = scmp.eq.s32.totalorder %s19, 1
    %p84 = por %p82, %p83
    %p86 = scmp.ne.s32.totalorder %s71, %s85
    %p87 = scmp.eq.s32.totalorder %s19, 0
    %p88 = por %p86, %p87
    %s90 = sadd.s32 %s89, 1
    %p93 = scmp.eq.s32.totalorder %s13, 1
    %p94 = scmp.ne.s32.totalorder %s89, %s91
    %p95 = scmp.eq.s32.totalorder %s13, 0
    %p96 = por %p94, %p95
    %p97 = scmp.ne.s32.totalorder %s89, %s91
    %p98 = scmp.eq.s32.totalorder %s18, 1
    %p99 = por %p97, %p98
    %p100 = scmp.ne.s32.totalorder %s91, %s92
    %p101 = scmp.eq.s32.totalorder %s18, 0
    %p102 = por %p100, %p101
    %p103 = scmp.ne.s32.totalorder %s91, %s92
    %p104 = scmp.eq.s32.totalorder %s19, 1
    %p105 = por %p103, %p104
    %p107 = scmp.ne.s32.totalorder %s92, %s106
    %p108 = scmp.eq.s32.totalorder %s19, 0
    %p109 = por %p107, %p108
    %s111 = sadd.s32 %s110, 1
    %p114 = scmp.eq.s32.totalorder %s13, 1
    %p115 = scmp.ne.s32.totalorder %s110, %s112
    %p116 = scmp.eq.s32.totalorder %s13, 0
    %p117 = por %p115, %p116
    %p118 = scmp.ne.s32.totalorder %s110, %s112
    %p119 = scmp.eq.s32.totalorder %s18, 1
    %p120 = por %p118, %p119
    %p121 = scmp.ne.s32.totalorder %s112, %s113
    %p122 = scmp.eq.s32.totalorder %s18, 0
    %p123 = por %p121, %p122
    %p124 = scmp.ne.s32.totalorder %s112, %s113
    %p125 = scmp.eq.s32.totalorder %s19, 1
    %p126 = por %p124, %p125
    %p128 = scmp.ne.s32.totalorder %s113, %s127
    %p129 = scmp.eq.s32.totalorder %s19, 0
    %p130 = por %p128, %p129
    %s132 = sadd.s32 %s131, 1
    %p135 = scmp.eq.s32.totalorder %s13, 1
    %p136 = scmp.ne.s32.totalorder %s131, %s133
    %p137 = scmp.eq.s32.totalorder %s13, 0
    %p138 = por %p136, %p137
    %p139 = scmp.ne.s32.totalorder %s131, %s133
    %p140 = scmp.eq.s32.totalorder %s18, 1
    %p141 = por %p139, %p140
    %p142 = scmp.ne.s32.totalorder %s133, %s134
    %p143 = scmp.eq.s32.totalorder %s18, 0
    %p144 = por %p142, %p143
    %p145 = scmp.ne.s32.totalorder %s133, %s134
    %p146 = scmp.eq.s32.totalorder %s19, 1
    %p147 = por %p145, %p146
    %p149 = scmp.ne.s32.totalorder %s134, %s148
    %p150 = scmp.eq.s32.totalorder %s19, 0
    %p151 = por %p149, %p150
    %s153 = sadd.s32 %s152, 1
    %p156 = scmp.eq.s32.totalorder %s13, 1
    %p157 = scmp.ne.s32.totalorder %s152, %s154
    %p158 = scmp.eq.s32.totalorder %s13, 0
    %p159 = por %p157, %p158
    %p160 = scmp.ne.s32.totalorder %s152, %s154
    %p161 = scmp.eq.s32.totalorder %s18, 1
    %p162 = por %p160, %p161
    %p163 = scmp.ne.s32.totalorder %s154, %s155
    %p164 = scmp.eq.s32.totalorder %s18, 0
    %p165 = por %p163, %p164
    %p166 = scmp.ne.s32.totalorder %s154, %s155
    %p167 = scmp.eq.s32.totalorder %s19, 1
    %p168 = por %p166, %p167
    %p170 = scmp.ne.s32.totalorder %s155, %s169
    %p171 = scmp.eq.s32.totalorder %s19, 0
    %p172 = por %p170, %p171
    %s173 = ssub.s32 %s13, %s20
    %p174 = scmp.eq.s32.totalorder %s173, 0
    %s176 = sadd.s32 %s175, 1
    %s177 = scalar_select %p174, %s175, %s176
    %p180 = pneg %p174
    %p181 = scmp.eq.s32.totalorder %s13, 1
    %p182 = por %p180, %p181
    %p183 = scmp.ne.s32.totalorder %s175, %s178
    %p184 = scmp.eq.s32.totalorder %s13, 0
    %p185 = por %p183, %p184
    %p186 = scmp.ne.s32.totalorder %s175, %s178
    %p187 = scmp.eq.s32.totalorder %s18, 1
    %p188 = por %p186, %p187
    %p189 = scmp.ne.s32.totalorder %s178, %s179
    %p190 = scmp.eq.s32.totalorder %s18, 0
    %p191 = por %p189, %p190
    %p192 = scmp.ne.s32.totalorder %s178, %s179
    %p193 = scmp.eq.s32.totalorder %s19, 1
    %p194 = por %p192, %p193
    %p196 = scmp.ne.s32.totalorder %s179, %s195
    %p197 = scmp.eq.s32.totalorder %s19, 0
    %p198 = por %p196, %p197
    %p199 = scmp.le.s32.totalorder 1, %s13
    %p200 = scmp.lt.s32.totalorder %s13, 3
    %p201 = pnand %p199, %p200
    %p202 = pneg %p201
    // Predicated region
    $region9: #{poller_end_layer.1} parent=5 // pred_check
      _
    $region10: #{poller_end_layer.1} parent=5 // pred_check_branch
      %204 = sbr.rel (%p201) target = $region12
    $region11: #{poller_end_layer.1} parent=5 // pred_region
      %s205 = ssub.s32 %s13, 1
      // Predicated region
      $region13: #{poller_end_layer.1} parent=11 // pred_check
        %p206 = pneg %p60
      $region14: #{poller_end_layer.1} parent=11 // pred_check_branch
        %208 = sbr.rel (%p206) target = $region16
      $region15: #{poller_end_layer.1} parent=11 // pred_region
        _
      $region16: #{poller_end_layer.1} parent=11 // pred_fallthru
        _
      // Predicated region
      $region17: #{poller_end_layer.1} parent=11 // pred_check
        %p209 = pneg %p81
      $region18: #{poller_end_layer.1} parent=11 // pred_check_branch
        %211 = sbr.rel (%p209) target = $region20
      $region19: #{poller_end_layer.1} parent=11 // pred_region
        _
      $region20: #{poller_end_layer.1} parent=11 // pred_fallthru
        _
      // Predicated region
      $region21: #{poller_end_layer.1} parent=11 // pred_check
        %p212 = pneg %p102
      $region22: #{poller_end_layer.1} parent=11 // pred_check_branch
        %214 = sbr.rel (%p212) target = $region24
      $region23: #{poller_end_layer.1} parent=11 // pred_region
        _
      $region24: #{poller_end_layer.1} parent=11 // pred_fallthru
        _
      // Predicated region
      $region25: #{poller_end_layer.1} parent=11 // pred_check
        %p215 = pneg %p123
      $region26: #{poller_end_layer.1} parent=11 // pred_check_branch
        %217 = sbr.rel (%p215) target = $region28
      $region27: #{poller_end_layer.1} parent=11 // pred_region
        _
      $region28: #{poller_end_layer.1} parent=11 // pred_fallthru
        _
      // Predicated region
      $region29: #{poller_end_layer.1} parent=11 // pred_check
        %p218 = pneg %p144
      $region30: #{poller_end_layer.1} parent=11 // pred_check_branch
        %220 = sbr.rel (%p218) target = $region32
      $region31: #{poller_end_layer.1} parent=11 // pred_region
        _
      $region32: #{poller_end_layer.1} parent=11 // pred_fallthru
        _
      // Predicated region
      $region33: #{poller_end_layer.1} parent=11 // pred_check
        %p221 = pneg %p165
      $region34: #{poller_end_layer.1} parent=11 // pred_check_branch
        %223 = sbr.rel (%p221) target = $region36
      $region35: #{poller_end_layer.1} parent=11 // pred_region
        _
      $region36: #{poller_end_layer.1} parent=11 // pred_fallthru
        _
    $region12: #{poller_end_layer.1} parent=5 // pred_fallthru
      _
    %p224 = scmp.lt.s32.totalorder %s13, 2
    // Predicated region
    $region37: #{poller_end_layer.1} parent=5 // pred_check
      %p225 = pneg %p224
    $region38: #{poller_end_layer.1} parent=5 // pred_check_branch
      %227 = sbr.rel (%p225) target = $region40
    $region39: #{poller_end_layer.1} parent=5 // pred_region
      // Predicated region
      $region41: #{poller_end_layer.1} parent=39 // pred_check
        %p228 = pneg %p33
      $region42: #{poller_end_layer.1} parent=39 // pred_check_branch
        %230 = sbr.rel (%p228) target = $region44
      $region43: #{poller_end_layer.1} parent=39 // pred_region
        %p231 = scmp.lt.s32.totalorder %s13, 1
        %s232 = scalar_select %p231, %s13, 1
        %s233 = smul.addr %s232, 8
        %s234 = scalar_lea.vmem %s0, %s233
      $region44: #{poller_end_layer.1} parent=39 // pred_fallthru
        _
    $region40: #{poller_end_layer.1} parent=5 // pred_fallthru
      _
    %p235 = scmp.le.s32.totalorder 1, %s13
    %p236 = scmp.lt.s32.totalorder %s13, 3
    %p237 = pnand %p235, %p236
    %p238 = pneg %p237
    // Predicated region
    $region45: #{poller_end_layer.1} parent=5 // pred_check
      _
    $region46: #{poller_end_layer.1} parent=5 // pred_check_branch
      %240 = sbr.rel (%p237) target = $region48
    $region47: #{poller_end_layer.1} parent=5 // pred_region
      %s241 = ssub.s32 %s13, 1
      %p242 = scmp.lt.s32.totalorder %s18, 1
      %s243 = scalar_select %p242, %s18, 1
      %s244 = smul.addr %s243, 8
      %s245 = scalar_lea.vmem %s0, %s244
      %p246 = pneg %p39
      %p247 = pneg %p36
      %p248 = pneg %p60
      %p249 = pneg %p57
      %p250 = pneg %p81
      %p251 = pneg %p78
      %p252 = pneg %p102
      %p253 = pneg %p99
      %p254 = pneg %p123
      %p255 = pneg %p120
      %p256 = pneg %p144
      %p257 = pneg %p141
      %p258 = pneg %p165
      %p259 = pneg %p162
      %p260 = pneg %p191
      %p261 = pneg %p188
      %p262 = scmp.lt.s32.totalorder %s18, 1
      %s263 = scalar_select %p262, %s18, 1
      %s264 = smul.addr %s263, 8
      %s265 = scalar_lea.vmem %s7, %s264
      %p266 = scmp.lt.s32.totalorder %s18, 1
      %s267 = scalar_select %p266, %s18, 1
      %s268 = smul.addr %s267, 8
      %s269 = scalar_lea.vmem %s0, %s268
      %p270 = scmp.lt.s32.totalorder %s18, 1
      %s271 = scalar_select %p270, %s18, 1
      %s272 = smul.addr %s271, 8
      %s273 = scalar_lea.vmem %s7, %s272
      %v275 = vld [vmem:[%s1] sm:$0xf]
      %v276 = vld [vmem:[%s1 + $0x4] sm:$0xf]
      %v277 = vld [vmem:[%s1 + $0x8] sm:$0xf]
      %v278 = vld [vmem:[%s1 + $0xc] sm:$0xf]
      %v279 = vld [vmem:[%s269] sm:$0xff]
      %v280 = vpack.c.bf16 %v279, %v279
      %v281 = vld [vmem:[%s2] sm:$0x1]
      %v283 = vlaneseq
      %v284 = vshrl.u32 %v283, 7
      %v285 = vsub.s32 0, %v284
      %v286 = vrot.slane %v281, %v285
      %v292 = vunpack.c.l.b16 %v275
      %v293 = vunpack.c.l.b16 %v276
      %v294 = vunpack.c.l.b16 %v277
      %v295 = vunpack.c.l.b16 %v278
      %v296 = vpack.c.b16 %v293, %v292
      %v297 = vpack.c.b16 %v295, %v294
      %vm300 = vcmask 261120
      %v302 = vsel %vm300, %v280, 0
      %304 = vmatprep.subr.bf16.mxu0 0
      %305 = vmatpush1.bf16.msra.mxu0 %v296
      %306 = vmatprep.subr.bf16.mxu0 0
      %307 = vmatpush1.bf16.msra.mxu0 %v297
      %308 = vmatprep.subr.bf16.mxu0 0
      %309 = vmatpush1.bf16.msra.mxu0 0
      %310 = vmatprep.subr.bf16.mxu0 0
      %311 = vmatpush1.bf16.msra.mxu0 0
      %312 = vmatprep.subr.bf16.mxu0 0
      %313 = vmatpush1.bf16.msra.mxu0 0
      %314 = vmatprep.subr.bf16.mxu0 0
      %315 = vmatpush1.bf16.msra.mxu0 0
      %316 = vmatprep.subr.bf16.mxu0 0
      %317 = vmatpush1.bf16.msra.mxu0 0
      %318 = vmatprep.subr.bf16.mxu0 0
      %319 = vmatpush1.bf16.msra.mxu0 0
      %320 = vmatprep.subr.bf16.mxu0 0
      %321 = vmatpush1.bf16.msra.mxu0 0
      %322 = vmatprep.subr.bf16.mxu0 0
      %323 = vmatpush1.bf16.msra.mxu0 0
      %324 = vmatprep.subr.bf16.mxu0 0
      %325 = vmatpush1.bf16.msra.mxu0 0
      %326 = vmatprep.subr.bf16.mxu0 0
      %327 = vmatpush1.bf16.msra.mxu0 0
      %328 = vmatprep.subr.bf16.mxu0 0
      %329 = vmatpush1.bf16.msra.mxu0 0
      %330 = vmatprep.subr.bf16.mxu0 0
      %331 = vmatpush1.bf16.msra.mxu0 0
      %332 = vmatprep.subr.bf16.mxu0 0
      %333 = vmatpush1.bf16.msra.mxu0 0
      %334 = vmatprep.subr.bf16.mxu0 0
      %335 = vmatpush1.bf16.msra.mxu0 0
      %336 = vmatprep.mubr.bf16.mxu0 0
      %337 = vmatmul.mubr.bf16.gmra.mrb[0].mxu0 %v302
      %v338 = vpop.f32.mrb[0].mxu0
      %v339 = vadd.f32 %v286, %v338
      %v340 = vpop.f32.mrb[0].mxu0
      %v341 = vpop.f32.mrb[0].mxu0
      %v342 = vpop.f32.mrb[0].mxu0
      %343 = vdwg.mxu0
      %v344 = vtanh.pop %v339
      %345 = vadd.xlane.f32.xlu0 %v344
      %v346 = vpop.xlane.xlu0 %345
      %v347 = vmul.f32 %v346, 0.03125
      %v348 = vmul.f32 %v344, %v344
      %349 = vadd.xlane.f32.xlu0 %v348
      %v350 = vpop.xlane.xlu0 %349
      %v351 = vmul.f32 %v350, 0.03125
      %v352 = vmul.f32 %v347, %v347
      %v353 = vsub.f32 %v351, %v352
      %v354 = vmax.f32 %v353, 0.0
      %v355 = vsub.f32 %v344, %v347
      %v356 = vadd.f32 %v354, 1e-05
      %v357 = vrsqrt.pop %v356
      %v358 = vmul.f32 %v355, %v357
      %v359 = vld [vmem:[%s3] sm:$0x1]
      %v361 = vlaneseq
      %v362 = vshrl.u32 %v361, 7
      %v363 = vsub.s32 0, %v362
      %v364 = vrot.slane %v359, %v363
      %v366 = vmul.f32 %v358, %v364
      %v367 = vld [vmem:[%s4] sm:$0x1]
      %v369 = vlaneseq
      %v370 = vshrl.u32 %v369, 7
      %v371 = vsub.s32 0, %v370
      %v372 = vrot.slane %v367, %v371
      %v374 = vadd.f32 %v366, %v372
      %v375 = vld [vmem:[%s5] sm:$0xf]
      %v376 = vld [vmem:[%s5 + $0x4] sm:$0xf]
      %v377 = vld [vmem:[%s5 + $0x8] sm:$0xf]
      %v378 = vld [vmem:[%s5 + $0xc] sm:$0xf]
      %v379 = vld [vmem:[%s5 + $0x10] sm:$0xf]
      %v380 = vld [vmem:[%s5 + $0x14] sm:$0xf]
      %v381 = vld [vmem:[%s5 + $0x18] sm:$0xf]
      %v382 = vld [vmem:[%s5 + $0x1c] sm:$0xf]
      %v383 = vld [vmem:[%s5 + $0x20] sm:$0xf]
      %v384 = vld [vmem:[%s5 + $0x24] sm:$0xf]
      %v385 = vld [vmem:[%s5 + $0x28] sm:$0xf]
      %v386 = vld [vmem:[%s5 + $0x2c] sm:$0xf]
      %v387 = vld [vmem:[%s5 + $0x30] sm:$0xf]
      %v388 = vld [vmem:[%s5 + $0x34] sm:$0xf]
      %v389 = vld [vmem:[%s5 + $0x38] sm:$0xf]
      %v390 = vld [vmem:[%s5 + $0x3c] sm:$0xf]
      %v391 = vpack.c.bf16 %v374, %v374
      %v392 = vld [vmem:[%s6] sm:$0x1]
      %v394 = vlaneseq
      %v395 = vshrl.u32 %v394, 7
      %v396 = vsub.s32 0, %v395
      %v397 = vrot.slane %v392, %v396
      %v415 = vunpack.c.l.b16 %v375
      %v416 = vunpack.c.l.b16 %v376
      %v417 = vunpack.c.l.b16 %v377
      %v418 = vunpack.c.l.b16 %v378
      %v419 = vunpack.c.l.b16 %v379
      %v420 = vunpack.c.l.b16 %v380
      %v421 = vunpack.c.l.b16 %v381
      %v422 = vunpack.c.l.b16 %v382
      %v423 = vunpack.c.l.b16 %v383
      %v424 = vunpack.c.l.b16 %v384
      %v425 = vunpack.c.l.b16 %v385
      %v426 = vunpack.c.l.b16 %v386
      %v427 = vunpack.c.l.b16 %v387
      %v428 = vunpack.c.l.b16 %v388
      %v429 = vunpack.c.l.b16 %v389
      %v430 = vunpack.c.l.b16 %v390
      %v431 = vpack.c.b16 %v416, %v415
      %v432 = vpack.c.b16 %v418, %v417
      %v433 = vpack.c.b16 %v420, %v419
      %v434 = vpack.c.b16 %v422, %v421
      %v435 = vpack.c.b16 %v424, %v423
      %v436 = vpack.c.b16 %v426, %v425
      %v437 = vpack.c.b16 %v428, %v427
      %v438 = vpack.c.b16 %v430, %v429
      %447 = vmatprep.subr.bf16.mxu0 0
      %448 = vmatpush1.bf16.msra.mxu0 %v431
      %449 = vmatprep.subr.bf16.mxu0 0
      %450 = vmatpush1.bf16.msra.mxu0 %v432
      %451 = vmatprep.subr.bf16.mxu0 0
      %452 = vmatpush1.bf16.msra.mxu0 %v433
      %453 = vmatprep.subr.bf16.mxu0 0
      %454 = vmatpush1.bf16.msra.mxu0 %v434
      %455 = vmatprep.subr.bf16.mxu0 0
      %456 = vmatpush1.bf16.msra.mxu0 %v435
      %457 = vmatprep.subr.bf16.mxu0 0
      %458 = vmatpush1.bf16.msra.mxu0 %v436
      %459 = vmatprep.subr.bf16.mxu0 0
      %460 = vmatpush1.bf16.msra.mxu0 %v437
      %461 = vmatprep.subr.bf16.mxu0 0
      %462 = vmatpush1.bf16.msra.mxu0 %v438
      %463 = vmatprep.subr.bf16.mxu0 0
      %464 = vmatpush1.bf16.msra.mxu0 0
      %465 = vmatprep.subr.bf16.mxu0 0
      %466 = vmatpush1.bf16.msra.mxu0 0
      %467 = vmatprep.subr.bf16.mxu0 0
      %468 = vmatpush1.bf16.msra.mxu0 0
      %469 = vmatprep.subr.bf16.mxu0 0
      %470 = vmatpush1.bf16.msra.mxu0 0
      %471 = vmatprep.subr.bf16.mxu0 0
      %472 = vmatpush1.bf16.msra.mxu0 0
      %473 = vmatprep.subr.bf16.mxu0 0
      %474 = vmatpush1.bf16.msra.mxu0 0
      %475 = vmatprep.subr.bf16.mxu0 0
      %476 = vmatpush1.bf16.msra.mxu0 0
      %477 = vmatprep.subr.bf16.mxu0 0
      %478 = vmatpush1.bf16.msra.mxu0 0
      %479 = vmatprep.mubr.bf16.mxu0 0
      %480 = vmatmul.mubr.bf16.gmra.mrb[0].mxu0 %v391
      %v481 = vpop.f32.mrb[0].mxu0
      %v482 = vadd.f32 %v397, %v481
      %v483 = vpop.f32.mrb[0].mxu0
      %v484 = vpop.f32.mrb[0].mxu0
      %v485 = vpop.f32.mrb[0].mxu0
      %486 = vdwg.mxu0
      %487 = vst [vmem:[%s273] sm:$0xff] %v482
      %p488 = scmp.lt.s32.totalorder %s18, 1
      %s489 = scalar_select %p488, %s18, 1
      %s490 = smul.addr %s489, 8
      %s491 = scalar_lea.vmem %s7, %s490
      // Predicated region
      $region49: #{poller_end_layer.1} parent=47 // pred_check
        %p492 = pneg %p188
      $region50: #{poller_end_layer.1} parent=47 // pred_check_branch
        %494 = sbr.rel (%p492) target = $region52
      $region51: #{poller_end_layer.1} parent=47 // pred_region
        _
      $region52: #{poller_end_layer.1} parent=47 // pred_fallthru
        _
    $region48: #{poller_end_layer.1} parent=5 // pred_fallthru
      _
    %p495 = scmp.le.s32.totalorder 2, %s13
    // Predicated region
    $region53: #{poller_end_layer.1} parent=5 // pred_check
      %p496 = pneg %p495
    $region54: #{poller_end_layer.1} parent=5 // pred_check_branch
      %498 = sbr.rel (%p496) target = $region56
    $region55: #{poller_end_layer.1} parent=5 // pred_region
      %s499 = ssub.s32 %s13, 2
      // Predicated region
      $region57: #{poller_end_layer.1} parent=55 // pred_check
        %p500 = pneg %p194
      $region58: #{poller_end_layer.1} parent=55 // pred_check_branch
        %502 = sbr.rel (%p500) target = $region60
      $region59: #{poller_end_layer.1} parent=55 // pred_region
        %p503 = scmp.lt.s32.totalorder %s19, 1
        %s504 = scalar_select %p503, %s19, 1
        %s505 = smul.addr %s504, 8
        %s506 = scalar_lea.vmem %s7, %s505
      $region60: #{poller_end_layer.1} parent=55 // pred_fallthru
        _
    $region56: #{poller_end_layer.1} parent=5 // pred_fallthru
      _
  $region6: #{poller_end_layer.1} parent=0 // loop_footer
    %s17 = sadd.s32 1, %s13
  $region7: #{poller_end_layer.1} parent=0 // loop_footer_branch
    %12 = sbr.rel target = $region3
  $region8: #{poller_end_layer.1} parent=0 // loop_exit
    _

</llo_original>
